<compile_context>
chip_gen: v7x
topology: tpu7x:2x2x1
jax: 0.10.0
libtpu: 0.0.40
codegen_flags: <defaults>
</compile_context>

<pallas_src>
import jax
import jax.numpy as jnp
from jax.experimental import pallas as pl
from jax.experimental.pallas import tpu as pltpu


def _round_up(x, m):
    return ((x + m - 1) // m) * m


def _final_layer_kernel(x_ref, shift_ref, scale_ref, wl_ref, bl_ref, o_ref):
    # x_ref:     (tT, H)
    # shift_ref: (1, H)     scale_ref: (1, H)
    # wl_ref:    (H, O_pad) bl_ref:    (1, O_pad)
    # o_ref:     (tT, O_pad)
    x = x_ref[...].astype(jnp.float32)                      # (tT, H)
    shift = shift_ref[...].astype(jnp.float32)              # (1, H)
    scale = scale_ref[...].astype(jnp.float32)              # (1, H)

    # LayerNorm over hidden dim, eps=1e-6, no affine params (f32 math,
    # two-pass variance kept for numerical stability).
    mean = jnp.mean(x, axis=-1, keepdims=True)
    xc = x - mean
    var = jnp.mean(xc * xc, axis=-1, keepdims=True)
    xn = xc * jax.lax.rsqrt(var + 1e-6)

    # modulate: x * (1 + scale) + shift  (broadcast (1,H) over tT rows)
    xm = xn * (1.0 + scale) + shift                         # (tT, H)

    # final linear: (tT, H) @ (H, O_pad) + (1, O_pad)
    # Operands fed in the weight storage dtype (bf16 fast path on all gens,
    # keeps v5e's MXU off the f32 slow path), f32 accumulation.
    out = jnp.dot(xm.astype(wl_ref.dtype), wl_ref[...],
                  preferred_element_type=jnp.float32)
    out = out + bl_ref[...].astype(jnp.float32)
    o_ref[...] = out.astype(o_ref.dtype)


def _resident_spec(block_shape, index_map):
    """Grid-invariant operand (constant index_map): request a single pipeline
    buffer so the second buffer's VMEM isn't wasted (matters most on v7x's
    64 MiB VMEM).  Falls back to the default spec on older BlockSpec APIs."""
    try:
        return pl.BlockSpec(block_shape, index_map, pipeline_mode=pl.Buffered(1))
    except TypeError:
        return pl.BlockSpec(block_shape, index_map)


def pad_linear_params(w_lin, b_lin):
    """Pad the final linear weights to a lane-dense (multiple-of-128) width.
    Do this ONCE at parameter-init time and pass the padded tensors to
    final_layer_forward (with out_features=O) to avoid a per-call pad."""
    H, O = w_lin.shape
    O_pad = _round_up(O, 128)
    wl_p = jnp.zeros((H, O_pad), w_lin.dtype).at[:, :O].set(w_lin)
    bl_p = jnp.zeros((1, O_pad), b_lin.dtype).at[0, :O].set(b_lin.reshape(-1))
    return wl_p, bl_p


def final_layer_forward(x, c, w_ada, b_ada, w_lin, b_lin, *,
                        out_features=None, t_tile=1024, return_padded=False):
    """FinalLayer forward.

    x: (B, T, H), c: (B, 1, H), w_ada: (H, 2H), b_ada: (2H,),
    w_lin: (H, O) or pre-padded (H, O_pad), b_lin: (O,) / (1, O_pad)
    -> (B, T, O)   (or (B, T, O_pad) if return_padded=True)

    Performance notes:
      * Kernel is HBM-bandwidth bound: pass x (and w_lin/b_lin) in bf16 for a
        ~2x win; LayerNorm/modulate math stays f32 in-kernel; output dtype
        follows x.
      * Pre-pad weights once with pad_linear_params and pass out_features=O.
      * Prefer return_padded=True and slice/fuse at the consumer (e.g. fold
        into unpatchify) to avoid a materialized slice of the padded output.
      * t_tile=1024 fits comfortably under the 48 MiB VMEM limit for typical
        DiT hidden sizes on v5e/v6e/v7x; shrink only if H*t_tile*bytes*2
        approaches the limit (H >~ 8K in f32).
    """
    B, T, H = x.shape
    O_w = w_lin.shape[-1]
    O = out_features if out_features is not None else O_w
    O_pad = _round_up(O_w, 128)                             # lane-dense output width

    # --- Hoisted adaLN branch (M=1 matvec; cheap in plain XLA) -----------------
    silu_c = c * jax.nn.sigmoid(c)                          # (B, 1, H)
    ada = silu_c @ w_ada + b_ada                            # (B, 1, 2H)
    shift = ada[..., :H]                                    # (B, 1, H)
    scale = ada[..., H:]                                    # (B, 1, H)

    # --- Lane-dense final-linear weights (use pre-padded tensors if supplied) --
    if O_w == O_pad:
        wl_p = w_lin
        bl_p = b_lin.reshape(1, O_pad)
    else:
        wl_p, bl_p = pad_linear_params(w_lin, b_lin)

    # --- Sequence tiling: fixed 16-multiple tile, ragged last block via cdiv ---
    tT = T if T <= t_tile else t_tile
    n_t = pl.cdiv(T, tT)
    # v7x has 2 TensorCores: keep >= 2 parallel grid steps for B == 1.
    if B * n_t < 2 and T >= 32:
        tT = _round_up(pl.cdiv(T, 2), 16)
        n_t = pl.cdiv(T, tT)
    grid = (B, n_t)

    x_spec = pl.BlockSpec((None, tT, H), lambda b, t: (b, t, 0))
    shift_spec = pl.BlockSpec((None, 1, H), lambda b, t: (b, 0, 0))
    scale_spec = pl.BlockSpec((None, 1, H), lambda b, t: (b, 0, 0))
    out_spec = pl.BlockSpec((None, tT, O_pad), lambda b, t: (b, t, 0))

    def _run(w_spec, b_spec):
        return pl.pallas_call(
            _final_layer_kernel,
            out_shape=jax.ShapeDtypeStruct((B, T, O_pad), x.dtype),
            grid_spec=pltpu.PrefetchScalarGridSpec(
                num_scalar_prefetch=0,
                grid=grid,
                in_specs=[x_spec, shift_spec, scale_spec, w_spec, b_spec],
                out_specs=out_spec,
            ),
            compiler_params=pltpu.CompilerParams(
                dimension_semantics=("parallel", "parallel"),
                vmem_limit_bytes=48 * 1024 * 1024,
            ),
        )(x, shift, scale, wl_p, bl_p)

    try:
        # Grid-invariant W/b: single pipeline buffer (constant index_map).
        out_padded = _run(_resident_spec((H, O_pad), lambda b, t: (0, 0)),
                          _resident_spec((1, O_pad), lambda b, t: (0, 0)))
    except Exception:
        # pipeline_mode / Buffered(1) not supported by this lowering:
        # fall back to default double-buffered specs (previously verified path).
        out_padded = _run(pl.BlockSpec((H, O_pad), lambda b, t: (0, 0)),
                          pl.BlockSpec((1, O_pad), lambda b, t: (0, 0)))

    if return_padded:
        # TODO(synk): consumers (unpatchify) should slice [..., :O] themselves
        # so XLA fuses it and no inflated intermediate is materialized.
        return out_padded
    return out_padded[..., :O]


def final_layer_reference(x, c, w_ada, b_ada, w_lin, b_lin):
    """Pure-JAX reference mirroring the PyTorch forward exactly (f32)."""
    silu_c = c * jax.nn.sigmoid(c)
    ada = silu_c @ w_ada + b_ada                       # (B, 1, 2H)
    H = x.shape[-1]
    shift, scale = ada[..., :H], ada[..., H:]
    mean = jnp.mean(x, axis=-1, keepdims=True)
    var = jnp.mean((x - mean) ** 2, axis=-1, keepdims=True)
    xn = (x - mean) / jnp.sqrt(var + 1e-6)
    xm = xn * (1 + scale) + shift
    return xm @ w_lin + b_lin


if __name__ == "__main__":
    # Small shapes consistent with the module.
    B, T = 2, 8
    hidden_size = 32
    patch_size = 2
    out_channels = 4
    O = patch_size * patch_size * out_channels     # 16

    key = jax.random.PRNGKey(0)
    kx, kc, kwa, kba, kwl, kbl = jax.random.split(key, 6)

    x = jax.random.normal(kx, (B, T, hidden_size), dtype=jnp.float32)
    c = jax.random.normal(kc, (B, 1, hidden_size), dtype=jnp.float32)

    # Deterministic parameter init (synthetic; shapes match the nn.Linear defs).
    w_ada = jax.random.normal(kwa, (hidden_size, 2 * hidden_size), jnp.float32) * 0.05
    b_ada = jax.random.normal(kba, (2 * hidden_size,), jnp.float32) * 0.05
    w_lin = jax.random.normal(kwl, (hidden_size, O), jnp.float32) * 0.05
    b_lin = jax.random.normal(kbl, (O,), jnp.float32) * 0.05

    ref = final_layer_reference(x, c, w_ada, b_ada, w_lin, b_lin)

    # ---- f32 path (tight check), weights pre-padded once as at init time -----
    wl_p, bl_p = pad_linear_params(w_lin, b_lin)
    out = final_layer_forward(x, c, w_ada, b_ada, wl_p, bl_p, out_features=O)
    out = jax.block_until_ready(out)
    assert out.shape == (B, T, O), out.shape
    assert jnp.allclose(out, ref, atol=1e-4, rtol=1e-4), \
        float(jnp.max(jnp.abs(out - ref)))

    # ---- bf16 fast path (activations + weights + output), loose tolerance ----
    x_bf = x.astype(jnp.bfloat16)
    wl_bf, bl_bf = pad_linear_params(w_lin.astype(jnp.bfloat16),
                                     b_lin.astype(jnp.bfloat16))
    out_bf = final_layer_forward(x_bf, c, w_ada, b_ada, wl_bf, bl_bf,
                                 out_features=O)
    out_bf = jax.block_until_ready(out_bf)
    assert out_bf.shape == (B, T, O), out_bf.shape
    assert out_bf.dtype == jnp.bfloat16, out_bf.dtype
    assert jnp.allclose(out_bf.astype(jnp.float32), ref, atol=5e-2, rtol=5e-2), \
        float(jnp.max(jnp.abs(out_bf.astype(jnp.float32) - ref)))

    print("KERNEL_OK")
</pallas_src>

<mosaic_0001>
module attributes {stable_mosaic.version = 11 : i64} {
  func.func @_final_layer_kernel(%arg0: i32, %arg1: i32, %arg2: memref<1x8x32xf32, #tpu.memory_space<vmem>>, %arg3: memref<1x1x32xf32, #tpu.memory_space<vmem>>, %arg4: memref<1x1x32xf32, #tpu.memory_space<vmem>>, %arg5: memref<32x128xf32, #tpu.memory_space<vmem>>, %arg6: memref<1x128xf32, #tpu.memory_space<vmem>>, %arg7: memref<1x8x128xf32, #tpu.memory_space<vmem>>) attributes {dimension_semantics = [#tpu.dimension_semantics<parallel>, #tpu.dimension_semantics<parallel>], iteration_bounds = array<i64: 2, 1>, scalar_prefetch = 0 : i64, scratch_operands = 0 : i64, tpu.core_type = #tpu.core_type<tc>, window_params = [{transform_indices = @transform_0, window_bounds = array<i64: 1, 8, 32>}, {transform_indices = @transform_1, window_bounds = array<i64: 1, 1, 32>}, {transform_indices = @transform_2, window_bounds = array<i64: 1, 1, 32>}, {pipeline_mode = #tpu.pipeline_mode<synchronous>, transform_indices = @transform_3, window_bounds = array<i64: 32, 128>}, {pipeline_mode = #tpu.pipeline_mode<synchronous>, transform_indices = @transform_4, window_bounds = array<i64: 1, 128>}, {transform_indices = @transform_5, window_bounds = array<i64: 1, 8, 128>}]} {
    %c0 = arith.constant 0 : index
    %c0_0 = arith.constant 0 : index
    %c0_1 = arith.constant 0 : index
    %0 = vector.load %arg2[%c0, %c0_0, %c0_1] : memref<1x8x32xf32, #tpu.memory_space<vmem>>, vector<1x8x32xf32>
    %1 = vector.shape_cast %0 : vector<1x8x32xf32> to vector<8x32xf32>
    %c0_2 = arith.constant 0 : index
    %c0_3 = arith.constant 0 : index
    %c0_4 = arith.constant 0 : index
    %2 = vector.load %arg3[%c0_2, %c0_3, %c0_4] : memref<1x1x32xf32, #tpu.memory_space<vmem>>, vector<1x1x32xf32>
    %3 = vector.shape_cast %2 : vector<1x1x32xf32> to vector<1x32xf32>
    %c0_5 = arith.constant 0 : index
    %c0_6 = arith.constant 0 : index
    %c0_7 = arith.constant 0 : index
    %4 = vector.load %arg4[%c0_5, %c0_6, %c0_7] : memref<1x1x32xf32, #tpu.memory_space<vmem>>, vector<1x1x32xf32>
    %5 = vector.shape_cast %4 : vector<1x1x32xf32> to vector<1x32xf32>
    %cst = arith.constant dense<0.000000e+00> : vector<8xf32>
    %6 = vector.multi_reduction <add>, %1, %cst [1] : vector<8x32xf32> to vector<8xf32>
    %7 = vector.shape_cast %6 : vector<8xf32> to vector<8x1xf32>
    %cst_8 = arith.constant 3.200000e+01 : f32
    %8 = vector.broadcast %cst_8 : f32 to vector<8x1xf32>
    %9 = arith.divf %7, %8 : vector<8x1xf32>
    %10 = vector.broadcast %9 : vector<8x1xf32> to vector<8x32xf32>
    %11 = arith.subf %1, %10 : vector<8x32xf32>
    %12 = arith.mulf %11, %11 : vector<8x32xf32>
    %cst_9 = arith.constant dense<0.000000e+00> : vector<8xf32>
    %13 = vector.multi_reduction <add>, %12, %cst_9 [1] : vector<8x32xf32> to vector<8xf32>
    %14 = vector.shape_cast %13 : vector<8xf32> to vector<8x1xf32>
    %cst_10 = arith.constant 3.200000e+01 : f32
    %15 = vector.broadcast %cst_10 : f32 to vector<8x1xf32>
    %16 = arith.divf %14, %15 : vector<8x1xf32>
    %cst_11 = arith.constant 9.99999997E-7 : f32
    %17 = vector.broadcast %cst_11 : f32 to vector<8x1xf32>
    %18 = arith.addf %16, %17 : vector<8x1xf32>
    %19 = math.rsqrt %18 : vector<8x1xf32>
    %20 = vector.broadcast %19 : vector<8x1xf32> to vector<8x32xf32>
    %21 = arith.mulf %11, %20 : vector<8x32xf32>
    %cst_12 = arith.constant 1.000000e+00 : f32
    %22 = vector.broadcast %cst_12 : f32 to vector<1x32xf32>
    %23 = arith.addf %22, %5 : vector<1x32xf32>
    %24 = vector.broadcast %23 : vector<1x32xf32> to vector<8x32xf32>
    %25 = arith.mulf %21, %24 : vector<8x32xf32>
    %26 = vector.broadcast %3 : vector<1x32xf32> to vector<8x32xf32>
    %27 = arith.addf %25, %26 : vector<8x32xf32>
    %c0_13 = arith.constant 0 : index
    %c0_14 = arith.constant 0 : index
    %28 = vector.load %arg5[%c0_13, %c0_14] : memref<32x128xf32, #tpu.memory_space<vmem>>, vector<32x128xf32>
    %cst_15 = arith.constant dense<0.000000e+00> : vector<8x128xf32>
    %29 = tpu.matmul %27, %28, %cst_15 {dimension_numbers = #tpu.dot_dimension_numbers<[1], [0], [0], [1], [0, 0, 1, 1], [], []>} : vector<8x32xf32>, vector<32x128xf32>, vector<8x128xf32> -> vector<8x128xf32>
    %c0_16 = arith.constant 0 : index
    %c0_17 = arith.constant 0 : index
    %30 = vector.load %arg6[%c0_16, %c0_17] : memref<1x128xf32, #tpu.memory_space<vmem>>, vector<1x128xf32>
    %31 = vector.broadcast %30 : vector<1x128xf32> to vector<8x128xf32>
    %32 = arith.addf %29, %31 : vector<8x128xf32>
    %c0_18 = arith.constant 0 : index
    %c0_19 = arith.constant 0 : index
    %c0_20 = arith.constant 0 : index
    %33 = vector.load %arg7[%c0_18, %c0_19, %c0_20] : memref<1x8x128xf32, #tpu.memory_space<vmem>>, vector<1x8x128xf32>
    %34 = vector.shape_cast %33 : vector<1x8x128xf32> to vector<8x128xf32>
    %35 = vector.shape_cast %32 : vector<8x128xf32> to vector<1x8x128xf32>
    tpu.vector_store %arg7[%c0_18, %c0_19, %c0_20], %35 {strides = array<i32>} : memref<1x8x128xf32, #tpu.memory_space<vmem>>, vector<1x8x128xf32>,
    return
  }
  func.func @transform_0(%arg0: i32, %arg1: i32) -> (i32, i32, i32) {
    %c0_i32 = arith.constant 0 : i32
    %c0_i32_0 = arith.constant 0 : i32
    return %arg0, %arg1, %c0_i32 : i32, i32, i32
  }
  func.func @transform_1(%arg0: i32, %arg1: i32) -> (i32, i32, i32) {
    %c0_i32 = arith.constant 0 : i32
    %c0_i32_0 = arith.constant 0 : i32
    %c0_i32_1 = arith.constant 0 : i32
    return %arg0, %c0_i32, %c0_i32_0 : i32, i32, i32
  }
  func.func @transform_2(%arg0: i32, %arg1: i32) -> (i32, i32, i32) {
    %c0_i32 = arith.constant 0 : i32
    %c0_i32_0 = arith.constant 0 : i32
    %c0_i32_1 = arith.constant 0 : i32
    return %arg0, %c0_i32, %c0_i32_0 : i32, i32, i32
  }
  func.func @transform_3(%arg0: i32, %arg1: i32) -> (i32, i32) {
    %c0_i32 = arith.constant 0 : i32
    %c0_i32_0 = arith.constant 0 : i32
    %c0_i32_1 = arith.constant 0 : i32
    return %c0_i32, %c0_i32_0 : i32, i32
  }
  func.func @transform_4(%arg0: i32, %arg1: i32) -> (i32, i32) {
    %c0_i32 = arith.constant 0 : i32
    %c0_i32_0 = arith.constant 0 : i32
    %c0_i32_1 = arith.constant 0 : i32
    return %c0_i32, %c0_i32_0 : i32, i32
  }
  func.func @transform_5(%arg0: i32, %arg1: i32) -> (i32, i32, i32) {
    %c0_i32 = arith.constant 0 : i32
    %c0_i32_0 = arith.constant 0 : i32
    return %arg0, %arg1, %c0_i32 : i32, i32, i32
  }
}

module attributes {stable_mosaic.version = 11 : i64} {
  func.func @_final_layer_kernel(%arg0: i32, %arg1: i32, %arg2: memref<1x8x32xf32, #tpu.memory_space<vmem>>, %arg3: memref<1x1x32xf32, #tpu.memory_space<vmem>>, %arg4: memref<1x1x32xf32, #tpu.memory_space<vmem>>, %arg5: memref<32x128xf32, #tpu.memory_space<vmem>>, %arg6: memref<1x128xf32, #tpu.memory_space<vmem>>, %arg7: memref<1x8x128xf32, #tpu.memory_space<vmem>>) attributes {dimension_semantics = [#tpu.dimension_semantics<parallel>, #tpu.dimension_semantics<parallel>], iteration_bounds = array<i64: 2, 1>, scalar_prefetch = 0 : i64, scratch_operands = 0 : i64, tpu.core_type = #tpu.core_type<tc>, window_params = [{transform_indices = @transform_0, window_bounds = array<i64: 1, 8, 32>}, {transform_indices = @transform_1, window_bounds = array<i64: 1, 1, 32>}, {transform_indices = @transform_2, window_bounds = array<i64: 1, 1, 32>}, {pipeline_mode = #tpu.pipeline_mode<synchronous>, transform_indices = @transform_3, window_bounds = array<i64: 32, 128>}, {pipeline_mode = #tpu.pipeline_mode<synchronous>, transform_indices = @transform_4, window_bounds = array<i64: 1, 128>}, {transform_indices = @transform_5, window_bounds = array<i64: 1, 8, 128>}]} {
    %c0 = arith.constant 0 : index
    %c0_0 = arith.constant 0 : index
    %c0_1 = arith.constant 0 : index
    %0 = vector.load %arg2[%c0, %c0_0, %c0_1] : memref<1x8x32xf32, #tpu.memory_space<vmem>>, vector<1x8x32xf32>
    %1 = vector.shape_cast %0 : vector<1x8x32xf32> to vector<8x32xf32>
    %c0_2 = arith.constant 0 : index
    %c0_3 = arith.constant 0 : index
    %c0_4 = arith.constant 0 : index
    %2 = vector.load %arg3[%c0_2, %c0_3, %c0_4] : memref<1x1x32xf32, #tpu.memory_space<vmem>>, vector<1x1x32xf32>
    %3 = vector.shape_cast %2 : vector<1x1x32xf32> to vector<1x32xf32>
    %c0_5 = arith.constant 0 : index
    %c0_6 = arith.constant 0 : index
    %c0_7 = arith.constant 0 : index
    %4 = vector.load %arg4[%c0_5, %c0_6, %c0_7] : memref<1x1x32xf32, #tpu.memory_space<vmem>>, vector<1x1x32xf32>
    %5 = vector.shape_cast %4 : vector<1x1x32xf32> to vector<1x32xf32>
    %cst = arith.constant dense<0.000000e+00> : vector<8xf32>
    %6 = vector.multi_reduction <add>, %1, %cst [1] : vector<8x32xf32> to vector<8xf32>
    %7 = vector.shape_cast %6 : vector<8xf32> to vector<8x1xf32>
    %cst_8 = arith.constant 3.200000e+01 : f32
    %8 = vector.broadcast %cst_8 : f32 to vector<8x1xf32>
    %9 = arith.divf %7, %8 : vector<8x1xf32>
    %10 = vector.broadcast %9 : vector<8x1xf32> to vector<8x32xf32>
    %11 = arith.subf %1, %10 : vector<8x32xf32>
    %12 = arith.mulf %11, %11 : vector<8x32xf32>
    %cst_9 = arith.constant dense<0.000000e+00> : vector<8xf32>
    %13 = vector.multi_reduction <add>, %12, %cst_9 [1] : vector<8x32xf32> to vector<8xf32>
    %14 = vector.shape_cast %13 : vector<8xf32> to vector<8x1xf32>
    %cst_10 = arith.constant 3.200000e+01 : f32
    %15 = vector.broadcast %cst_10 : f32 to vector<8x1xf32>
    %16 = arith.divf %14, %15 : vector<8x1xf32>
    %cst_11 = arith.constant 9.99999997E-7 : f32
    %17 = vector.broadcast %cst_11 : f32 to vector<8x1xf32>
    %18 = arith.addf %16, %17 : vector<8x1xf32>
    %19 = math.rsqrt %18 : vector<8x1xf32>
    %20 = vector.broadcast %19 : vector<8x1xf32> to vector<8x32xf32>
    %21 = arith.mulf %11, %20 : vector<8x32xf32>
    %cst_12 = arith.constant 1.000000e+00 : f32
    %22 = vector.broadcast %cst_12 : f32 to vector<1x32xf32>
    %23 = arith.addf %22, %5 : vector<1x32xf32>
    %24 = vector.broadcast %23 : vector<1x32xf32> to vector<8x32xf32>
    %25 = arith.mulf %21, %24 : vector<8x32xf32>
    %26 = vector.broadcast %3 : vector<1x32xf32> to vector<8x32xf32>
    %27 = arith.addf %25, %26 : vector<8x32xf32>
    %c0_13 = arith.constant 0 : index
    %c0_14 = arith.constant 0 : index
    %28 = vector.load %arg5[%c0_13, %c0_14] : memref<32x128xf32, #tpu.memory_space<vmem>>, vector<32x128xf32>
    %cst_15 = arith.constant dense<0.000000e+00> : vector<8x128xf32>
    %29 = tpu.matmul %27, %28, %cst_15 {dimension_numbers = #tpu.dot_dimension_numbers<[1], [0], [0], [1], [0, 0, 1, 1], [], []>} : vector<8x32xf32>, vector<32x128xf32>, vector<8x128xf32> -> vector<8x128xf32>
    %c0_16 = arith.constant 0 : index
    %c0_17 = arith.constant 0 : index
    %30 = vector.load %arg6[%c0_16, %c0_17] : memref<1x128xf32, #tpu.memory_space<vmem>>, vector<1x128xf32>
    %31 = vector.broadcast %30 : vector<1x128xf32> to vector<8x128xf32>
    %32 = arith.addf %29, %31 : vector<8x128xf32>
    %c0_18 = arith.constant 0 : index
    %c0_19 = arith.constant 0 : index
    %c0_20 = arith.constant 0 : index
    %33 = vector.load %arg7[%c0_18, %c0_19, %c0_20] : memref<1x8x128xf32, #tpu.memory_space<vmem>>, vector<1x8x128xf32>
    %34 = vector.shape_cast %33 : vector<1x8x128xf32> to vector<8x128xf32>
    %35 = vector.shape_cast %32 : vector<8x128xf32> to vector<1x8x128xf32>
    tpu.vector_store %arg7[%c0_18, %c0_19, %c0_20], %35 {strides = array<i32>} : memref<1x8x128xf32, #tpu.memory_space<vmem>>, vector<1x8x128xf32>,
    return
  }
  func.func @transform_0(%arg0: i32, %arg1: i32) -> (i32, i32, i32) {
    %c0_i32 = arith.constant 0 : i32
    %c0_i32_0 = arith.constant 0 : i32
    return %arg0, %arg1, %c0_i32 : i32, i32, i32
  }
  func.func @transform_1(%arg0: i32, %arg1: i32) -> (i32, i32, i32) {
    %c0_i32 = arith.constant 0 : i32
    %c0_i32_0 = arith.constant 0 : i32
    %c0_i32_1 = arith.constant 0 : i32
    return %arg0, %c0_i32, %c0_i32_0 : i32, i32, i32
  }
  func.func @transform_2(%arg0: i32, %arg1: i32) -> (i32, i32, i32) {
    %c0_i32 = arith.constant 0 : i32
    %c0_i32_0 = arith.constant 0 : i32
    %c0_i32_1 = arith.constant 0 : i32
    return %arg0, %c0_i32, %c0_i32_0 : i32, i32, i32
  }
  func.func @transform_3(%arg0: i32, %arg1: i32) -> (i32, i32) {
    %c0_i32 = arith.constant 0 : i32
    %c0_i32_0 = arith.constant 0 : i32
    %c0_i32_1 = arith.constant 0 : i32
    return %c0_i32, %c0_i32_0 : i32, i32
  }
  func.func @transform_4(%arg0: i32, %arg1: i32) -> (i32, i32) {
    %c0_i32 = arith.constant 0 : i32
    %c0_i32_0 = arith.constant 0 : i32
    %c0_i32_1 = arith.constant 0 : i32
    return %c0_i32, %c0_i32_0 : i32, i32
  }
  func.func @transform_5(%arg0: i32, %arg1: i32) -> (i32, i32, i32) {
    %c0_i32 = arith.constant 0 : i32
    %c0_i32_0 = arith.constant 0 : i32
    return %arg0, %arg1, %c0_i32 : i32, i32, i32
  }
}

</mosaic_0001>

<llo_original>
// kernel: tpu_custom_call.1
$region0: #{tpu_custom_call.1}
  #allocation0 [shape = 'u32[]', space=smem, size = 0x4, offset = 0x4, fixed_abs, tag = 'smem constant byte address 0x4 - core index']
  #allocation1 [shape = 'u32[144,128]{1,0:T(1,128)}', space=vmem, size = 0x12000, scoped, tag = 'internal scratch']
  %s0 = inlined_call_operand.hbm [shape: f32[2,8,32], index: 0, kind: input, shape index: {}]
  %s1 = inlined_call_operand.vmem [shape: f32[2,1,32], index: 1, kind: input, shape index: {}]
  %s2 = inlined_call_operand.vmem [shape: f32[2,1,32], index: 2, kind: input, shape index: {}]
  %s3 = inlined_call_operand.hbm [shape: f32[32,128], index: 3, kind: input, shape index: {}]
  %s4 = inlined_call_operand.vmem [shape: f32[1,128], index: 4, kind: input, shape index: {}]
  %s5 = inlined_call_operand.hbm [shape: f32[2,8,128], index: 5, kind: output, shape index: {}]
  %s6 = sld [smem:[#allocation0]]
  $region61: #{tpu_custom_call.1} parent=0
    _
  %s8 = ssub.s32 1, %s6
  %s9 = scalar_select 0, %s8, %s6
  $region1: #{tpu_custom_call.1} parent=0
    #allocation2 [shape = 'u8[8192]{0}', space=vmem, size = 0x2000, scoped, tag = 'input window, operand 0']
    #allocation3 [shape = 's32[2]{0}', space=sflag, size = 0x8, scoped, tag = 'scoped memory for tpu_custom_call.1']
    #allocation4 [shape = 's32[2]{0}', space=sflag, size = 0x8, scoped, tag = 'scoped memory for tpu_custom_call.1']
    #allocation5 [shape = 'u8[16384]{0}', space=vmem, size = 0x4000, scoped, tag = 'input window, operand 3, single buffered']
    #allocation6 [shape = 's32[1]{0}', space=sflag, size = 0x4, scoped, tag = 'scoped memory for tpu_custom_call.1']
    #allocation7 [shape = 'u8[8192]{0}', space=vmem, size = 0x2000, scoped, tag = 'output window, operand 0']
    %10 = vsyncpa [#allocation3], 0
    %s11 = scalar_lea.sflag [#allocation3], 1
    %12 = vsyncpa %s11, 0
    %13 = vsyncpa [#allocation6], 0
    %14 = vsyncpa [#allocation4], 0
    %s15 = scalar_lea.sflag [#allocation4], 1
    %16 = vsyncpa %s15, 0
    loop: start=0, step=1, limit=4
    $region2: #{tpu_custom_call.1} parent=1 // loop_pre_header
      _
    $region3: #{tpu_custom_call.1} parent=1 // loop_header
      %s18 = sphi 0, %s22
      %p19 = scmp.ge.s32.totalorder %s18, 4
      %s25 = sphi 0, %s37
      %s26 = sphi 0, %s33
      %s27 = sphi 0, %s25
      %s28 = sphi 0, %s26
      %s29 = sphi 0, %s27
      %s30 = sphi 0, %s28
      %s42 = sphi 0, %s44
      %s45 = sphi 0, %s42
      %s46 = sphi 0, %s45
      %s62 = sphi 0, %s46
      %s68 = sphi 0, %s70
      %s71 = sphi 0, %s68
      %s72 = sphi 0, %s71
      %s88 = sphi 0, %s72
      %s94 = sphi 0, %s96
      %s97 = sphi 0, %s94
      %s98 = sphi 0, %s97
      %s114 = sphi 0, %s98
      %s118 = sphi 0, %s118
      %s120 = sphi 0, %s118
      %s121 = sphi 0, %s120
      %s135 = sphi 0, %s121
      %s139 = sphi 0, %s139
      %s141 = sphi 0, %s139
      %s142 = sphi 0, %s141
      %s156 = sphi 0, %s142
      %s164 = sphi 0, %s166
      %s167 = sphi 0, %s164
      %s168 = sphi 0, %s167
      %s184 = sphi 0, %s168
    $region4: #{tpu_custom_call.1} parent=1 // loop_header_branch
      %21 = sbr.rel (%p19) target = $region8
    $region5: #{tpu_custom_call.1} parent=1 // loop_body
      %s23 = ssub.s32 %s18, 1
      %s24 = ssub.s32 %s18, 2
      %s31 = sadd.s32 1, %s26
      %p32 = scmp.ge.s32.totalorder %s31, 1
      %s33 = scalar_select %p32, 0, %s31
      %s34 = sadd.s32 1, %s25
      %s35 = scalar_select %p32, %s34, %s25
      %p36 = scmp.ge.s32.totalorder %s35, 2
      %s37 = scalar_select %p36, 0, %s35
      %s38 = ssub.s32 %s25, %s37
      %s39 = ssub.s32 %s26, %s33
      %s40 = sor.u32 %s38, %s39
      %p41 = scmp.eq.s32.totalorder %s40, 0
      %s43 = sadd.s32 %s42, 1
      %s44 = scalar_select %p41, %s42, %s43
      %p47 = pneg %p41
      %p48 = scmp.eq.s32.totalorder %s18, 1
      %p49 = por %p47, %p48
      %p50 = scmp.ne.s32.totalorder %s42, %s45
      %p51 = scmp.eq.s32.totalorder %s18, 0
      %p52 = por %p50, %p51
      %p53 = scmp.ne.s32.totalorder %s42, %s45
      %p54 = scmp.eq.s32.totalorder %s23, 1
      %p55 = por %p53, %p54
      %p56 = scmp.ne.s32.totalorder %s45, %s46
      %p57 = scmp.eq.s32.totalorder %s23, 0
      %p58 = por %p56, %p57
      %p59 = scmp.ne.s32.totalorder %s45, %s46
      %p60 = scmp.eq.s32.totalorder %s24, 1
      %p61 = por %p59, %p60
      %p63 = scmp.ne.s32.totalorder %s46, %s62
      %p64 = scmp.eq.s32.totalorder %s24, 0
      %p65 = por %p63, %p64
      %s66 = ssub.s32 %s25, %s37
      %p67 = scmp.eq.s32.totalorder %s66, 0
      %s69 = sadd.s32 %s68, 1
      %s70 = scalar_select %p67, %s68, %s69
      %p73 = pneg %p67
      %p74 = scmp.eq.s32.totalorder %s18, 1
      %p75 = por %p73, %p74
      %p76 = scmp.ne.s32.totalorder %s68, %s71
      %p77 = scmp.eq.s32.totalorder %s18, 0
      %p78 = por %p76, %p77
      %p79 = scmp.ne.s32.totalorder %s68, %s71
      %p80 = scmp.eq.s32.totalorder %s23, 1
      %p81 = por %p79, %p80
      %p82 = scmp.ne.s32.totalorder %s71, %s72
      %p83 = scmp.eq.s32.totalorder %s23, 0
      %p84 = por %p82, %p83
      %p85 = scmp.ne.s32.totalorder %s71, %s72
      %p86 = scmp.eq.s32.totalorder %s24, 1
      %p87 = por %p85, %p86
      %p89 = scmp.ne.s32.totalorder %s72, %s88
      %p90 = scmp.eq.s32.totalorder %s24, 0
      %p91 = por %p89, %p90
      %s92 = ssub.s32 %s25, %s37
      %p93 = scmp.eq.s32.totalorder %s92, 0
      %s95 = sadd.s32 %s94, 1
      %s96 = scalar_select %p93, %s94, %s95
      %p99 = pneg %p93
      %p100 = scmp.eq.s32.totalorder %s18, 1
      %p101 = por %p99, %p100
      %p102 = scmp.ne.s32.totalorder %s94, %s97
      %p103 = scmp.eq.s32.totalorder %s18, 0
      %p104 = por %p102, %p103
      %p105 = scmp.ne.s32.totalorder %s94, %s97
      %p106 = scmp.eq.s32.totalorder %s23, 1
      %p107 = por %p105, %p106
      %p108 = scmp.ne.s32.totalorder %s97, %s98
      %p109 = scmp.eq.s32.totalorder %s23, 0
      %p110 = por %p108, %p109
      %p111 = scmp.ne.s32.totalorder %s97, %s98
      %p112 = scmp.eq.s32.totalorder %s24, 1
      %p113 = por %p111, %p112
      %p115 = scmp.ne.s32.totalorder %s98, %s114
      %p116 = scmp.eq.s32.totalorder %s24, 0
      %p117 = por %p115, %p116
      %s119 = sadd.s32 %s118, 1
      %p122 = scmp.eq.s32.totalorder %s18, 1
      %p123 = scmp.ne.s32.totalorder %s118, %s120
      %p124 = scmp.eq.s32.totalorder %s18, 0
      %p125 = por %p123, %p124
      %p126 = scmp.ne.s32.totalorder %s118, %s120
      %p127 = scmp.eq.s32.totalorder %s23, 1
      %p128 = por %p126, %p127
      %p129 = scmp.ne.s32.totalorder %s120, %s121
      %p130 = scmp.eq.s32.totalorder %s23, 0
      %p131 = por %p129, %p130
      %p132 = scmp.ne.s32.totalorder %s120, %s121
      %p133 = scmp.eq.s32.totalorder %s24, 1
      %p134 = por %p132, %p133
      %p136 = scmp.ne.s32.totalorder %s121, %s135
      %p137 = scmp.eq.s32.totalorder %s24, 0
      %p138 = por %p136, %p137
      %s140 = sadd.s32 %s139, 1
      %p143 = scmp.eq.s32.totalorder %s18, 1
      %p144 = scmp.ne.s32.totalorder %s139, %s141
      %p145 = scmp.eq.s32.totalorder %s18, 0
      %p146 = por %p144, %p145
      %p147 = scmp.ne.s32.totalorder %s139, %s141
      %p148 = scmp.eq.s32.totalorder %s23, 1
      %p149 = por %p147, %p148
      %p150 = scmp.ne.s32.totalorder %s141, %s142
      %p151 = scmp.eq.s32.totalorder %s23, 0
      %p152 = por %p150, %p151
      %p153 = scmp.ne.s32.totalorder %s141, %s142
      %p154 = scmp.eq.s32.totalorder %s24, 1
      %p155 = por %p153, %p154
      %p157 = scmp.ne.s32.totalorder %s142, %s156
      %p158 = scmp.eq.s32.totalorder %s24, 0
      %p159 = por %p157, %p158
      %s160 = ssub.s32 %s25, %s37
      %s161 = ssub.s32 %s26, %s33
      %s162 = sor.u32 %s160, %s161
      %p163 = scmp.eq.s32.totalorder %s162, 0
      %s165 = sadd.s32 %s164, 1
      %s166 = scalar_select %p163, %s164, %s165
      %p169 = pneg %p163
      %p170 = scmp.eq.s32.totalorder %s18, 1
      %p171 = por %p169, %p170
      %p172 = scmp.ne.s32.totalorder %s164, %s167
      %p173 = scmp.eq.s32.totalorder %s18, 0
      %p174 = por %p172, %p173
      %p175 = scmp.ne.s32.totalorder %s164, %s167
      %p176 = scmp.eq.s32.totalorder %s23, 1
      %p177 = por %p175, %p176
      %p178 = scmp.ne.s32.totalorder %s167, %s168
      %p179 = scmp.eq.s32.totalorder %s23, 0
      %p180 = por %p178, %p179
      %p181 = scmp.ne.s32.totalorder %s167, %s168
      %p182 = scmp.eq.s32.totalorder %s24, 1
      %p183 = por %p181, %p182
      %p185 = scmp.ne.s32.totalorder %s168, %s184
      %p186 = scmp.eq.s32.totalorder %s24, 0
      %p187 = por %p185, %p186
      %p188 = scmp.le.s32.totalorder 1, %s18
      %p189 = scmp.lt.s32.totalorder %s18, 3
      %p190 = pnand %p188, %p189
      %p191 = pneg %p190
      // Predicated region
      $region9: #{tpu_custom_call.1} parent=5 // pred_check
        _
      $region10: #{tpu_custom_call.1} parent=5 // pred_check_branch
        %193 = sbr.rel (%p190) target = $region12
      $region11: #{tpu_custom_call.1} parent=5 // pred_region
        %s194 = ssub.s32 %s18, 1
        // Predicated region
        $region13: #{tpu_custom_call.1} parent=11 // pred_check
          %p195 = pneg %p131
        $region14: #{tpu_custom_call.1} parent=11 // pred_check_branch
          %197 = sbr.rel (%p195) target = $region16
        $region15: #{tpu_custom_call.1} parent=11 // pred_region
          %s199 = ssub.s32 512, 512
          %200 = vsyncadd [#allocation6], %s199
          %s201 = sshll.u32 [#allocation5], 4
          %s202 = int_to_ptr.vmem [resolvable:$true] %s201
          %207 = dma.hbm_to_vmem [thread:$0]  %s3, 512, %s202, [#allocation6], 128, 128, 8
        $region16: #{tpu_custom_call.1} parent=11 // pred_fallthru
          _
        // Predicated region
        $region17: #{tpu_custom_call.1} parent=11 // pred_check
          %p208 = pneg %p152
        $region18: #{tpu_custom_call.1} parent=11 // pred_check_branch
          %210 = sbr.rel (%p208) target = $region20
        $region19: #{tpu_custom_call.1} parent=11 // pred_region
          _
        $region20: #{tpu_custom_call.1} parent=11 // pred_fallthru
          _
      $region12: #{tpu_custom_call.1} parent=5 // pred_fallthru
        _
      %p211 = scmp.lt.s32.totalorder %s18, 2
      // Predicated region
      $region21: #{tpu_custom_call.1} parent=5 // pred_check
        %p212 = pneg %p211
      $region22: #{tpu_custom_call.1} parent=5 // pred_check_branch
        %214 = sbr.rel (%p212) target = $region24
      $region23: #{tpu_custom_call.1} parent=5 // pred_region
        // Predicated region
        $region25: #{tpu_custom_call.1} parent=23 // pred_check
          %p215 = pneg %p52
        $region26: #{tpu_custom_call.1} parent=23 // pred_check_branch
          %217 = sbr.rel (%p215) target = $region28
        $region27: #{tpu_custom_call.1} parent=23 // pred_region
          %s218 = sand.u32 %s42, 1
          %s219 = scalar_lea.sflag [#allocation3], %s218
          %s220 = sand.u32 %s42, 1
          %s221 = smul.addr %s220, 8
          %s222 = scalar_lea.vmem [#allocation2], %s221
          %s224 = ssub.s32 128, 128
          %225 = vsyncadd %s219, %s224
          %s226 = sadd.s32 %s26, %s25
          %s227 = smul.addr %s226, 128
          %s228 = scalar_lea.hbm %s0, %s227
          %s230 = sshll.u32 %s222, 4
          %s231 = int_to_ptr.vmem [resolvable:$true] %s230
          %233 = dma.hbm_to_vmem [thread:$0]  %s228, 128, %s231, %s219
        $region28: #{tpu_custom_call.1} parent=23 // pred_fallthru
          _
        // Predicated region
        $region29: #{tpu_custom_call.1} parent=23 // pred_check
          %p234 = pneg %p78
        $region30: #{tpu_custom_call.1} parent=23 // pred_check_branch
          %236 = sbr.rel (%p234) target = $region32
        $region31: #{tpu_custom_call.1} parent=23 // pred_region
          %p237 = scmp.lt.s32.totalorder %s25, 1
          %s238 = scalar_select %p237, %s25, 1
          %s239 = scalar_lea.vmem %s1, %s238
        $region32: #{tpu_custom_call.1} parent=23 // pred_fallthru
          _
        // Predicated region
        $region33: #{tpu_custom_call.1} parent=23 // pred_check
          %p240 = pneg %p104
        $region34: #{tpu_custom_call.1} parent=23 // pred_check_branch
          %242 = sbr.rel (%p240) target = $region36
        $region35: #{tpu_custom_call.1} parent=23 // pred_region
          %p243 = scmp.lt.s32.totalorder %s25, 1
          %s244 = scalar_select %p243, %s25, 1
          %s245 = scalar_lea.vmem %s2, %s244
        $region36: #{tpu_custom_call.1} parent=23 // pred_fallthru
          _
      $region24: #{tpu_custom_call.1} parent=5 // pred_fallthru
        _
      %p246 = scmp.le.s32.totalorder 1, %s18
      %p247 = scmp.lt.s32.totalorder %s18, 3
      %p248 = pnand %p246, %p247
      %p249 = pneg %p248
      // Predicated region
      $region37: #{tpu_custom_call.1} parent=5 // pred_check
        _
      $region38: #{tpu_custom_call.1} parent=5 // pred_check_branch
        %251 = sbr.rel (%p248) target = $region40
      $region39: #{tpu_custom_call.1} parent=5 // pred_region
        %s252 = ssub.s32 %s18, 1
        %s253 = sand.u32 %s45, 1
        %s254 = scalar_lea.sflag [#allocation3], %s253
        %s255 = sand.u32 %s45, 1
        %s256 = smul.addr %s255, 8
        %s257 = scalar_lea.vmem [#allocation2], %s256
        // Predicated region
        $region41: #{tpu_custom_call.1} parent=39 // pred_check
          %p258 = pneg %p58
        $region42: #{tpu_custom_call.1} parent=39 // pred_check_branch
          %260 = sbr.rel (%p258) target = $region44
        $region43: #{tpu_custom_call.1} parent=39 // pred_region
          %261 = dma.done %s254, 128
        $region44: #{tpu_custom_call.1} parent=39 // pred_fallthru
          _
        // Predicated region
        $region45: #{tpu_custom_call.1} parent=39 // pred_check
          %p262 = pneg %p131
        $region46: #{tpu_custom_call.1} parent=39 // pred_check_branch
          %264 = sbr.rel (%p262) target = $region48
        $region47: #{tpu_custom_call.1} parent=39 // pred_region
          %265 = dma.done [#allocation6], 512
        $region48: #{tpu_custom_call.1} parent=39 // pred_fallthru
          _
        %s266 = sand.u32 %s45, 1
        %s267 = scalar_lea.sflag [#allocation3], %s266
        %s268 = sand.u32 %s45, 1
        %s269 = smul.addr %s268, 8
        %s270 = scalar_lea.vmem [#allocation2], %s269
        %p271 = pneg %p58
        %p272 = pneg %p55
        %p273 = scmp.lt.s32.totalorder %s27, 1
        %s274 = scalar_select %p273, %s27, 1
        %s275 = scalar_lea.vmem %s1, %s274
        %p276 = pneg %p84
        %p277 = pneg %p81
        %p278 = scmp.lt.s32.totalorder %s27, 1
        %s279 = scalar_select %p278, %s27, 1
        %s280 = scalar_lea.vmem %s2, %s279
        %p281 = pneg %p110
        %p282 = pneg %p107
        %p283 = pneg %p131
        %p284 = pneg %p128
        %p285 = pneg %p152
        %p286 = pneg %p149
        %p287 = pneg %p180
        %p288 = pneg %p177
        %s289 = sand.u32 %s167, 1
        %s290 = scalar_lea.sflag [#allocation4], %s289
        %s291 = sand.u32 %s167, 1
        %s292 = smul.addr %s291, 8
        %s293 = scalar_lea.vmem [#allocation7], %s292
        %p294 = scmp.lt.s32.totalorder %s27, 1
        %s295 = scalar_select %p294, %s27, 1
        %s296 = scalar_lea.vmem %s1, %s295
        %p297 = scmp.lt.s32.totalorder %s27, 1
        %s298 = scalar_select %p297, %s27, 1
        %s299 = scalar_lea.vmem %s2, %s298
        %v300 = vld [vmem:[%s257] sm:$0xff]
        %v301 = vld [vmem:[%s296] sm:$0x1]
        %v302 = vld [vmem:[%s299] sm:$0x1]
        %vm303 = vcmask 261120
        %v304 = vsel %vm303, %v300, 0.0
        %305 = vadd.xlane.f32.xlu0 %v304
        %v306 = vpop.xlane.xlu0 %305
        %v307 = vrcp.pop 32.0
        %v308 = vmul.f32 %v306, %v307
        %v309 = vsub.f32 %v300, %v308
        %v310 = vmul.f32 %v309, %v309
        %v311 = vsel %vm303, %v310, 0.0
        %312 = vadd.xlane.f32.xlu0 %v311
        %v313 = vpop.xlane.xlu0 %312
        %v314 = vmul.f32 %v313, %v307
        %v315 = vadd.f32 %v314, 1e-06
        %v316 = vrsqrt.pop %v315
        %v317 = vmul.f32 %v309, %v316
        %v318 = vadd.f32 %v302, 1.0
        %v320 = vlaneseq
        %v321 = vshrl.u32 %v320, 7
        %v322 = vsub.s32 0, %v321
        %v323 = vrot.slane %v318, %v322
        %v325 = vmul.f32 %v317, %v323
        %v327 = vlaneseq
        %v328 = vshrl.u32 %v327, 7
        %v329 = vsub.s32 0, %v328
        %v330 = vrot.slane %v301, %v329
        %v332 = vadd.f32 %v325, %v330
        %v333 = vld [vmem:[#allocation5] sm:$0xff]
        %v334 = vld [vmem:[#allocation5 + $0x8] sm:$0xff]
        %v335 = vld [vmem:[#allocation5 + $0x10] sm:$0xff]
        %v336 = vld [vmem:[#allocation5 + $0x18] sm:$0xff]
        %v337 = vld [vmem:[%s4] sm:$0x1]
        %v339 = vlaneseq
        %v340 = vshrl.u32 %v339, 7
        %v341 = vsub.s32 0, %v340
        %v342 = vrot.slane %v337, %v341
        %v345 = vsel %vm303, %v332, 0
        %347 = vmatprep.subr.mxu0 0.0
        %348 = vmatpush1.msra.mxu0 %v333
        %349 = vmatprep.subr.mxu0 0.0
        %350 = vmatpush1.msra.mxu0 %v334
        %351 = vmatprep.subr.mxu0 0.0
        %352 = vmatpush1.msra.mxu0 %v335
        %353 = vmatprep.subr.mxu0 0.0
        %354 = vmatpush1.msra.mxu0 %v336
        %355 = vmatprep.subr.mxu0 0.0
        %356 = vmatpush1.msra.mxu0 0.0
        %357 = vmatprep.subr.mxu0 0.0
        %358 = vmatpush1.msra.mxu0 0.0
        %359 = vmatprep.subr.mxu0 0.0
        %360 = vmatpush1.msra.mxu0 0.0
        %361 = vmatprep.subr.mxu0 0.0
        %362 = vmatpush1.msra.mxu0 0.0
        %363 = vmatprep.subr.mxu0 0.0
        %364 = vmatpush1.msra.mxu0 0.0
        %365 = vmatprep.subr.mxu0 0.0
        %366 = vmatpush1.msra.mxu0 0.0
        %367 = vmatprep.subr.mxu0 0.0
        %368 = vmatpush1.msra.mxu0 0.0
        %369 = vmatprep.subr.mxu0 0.0
        %370 = vmatpush1.msra.mxu0 0.0
        %371 = vmatprep.subr.mxu0 0.0
        %372 = vmatpush1.msra.mxu0 0.0
        %373 = vmatprep.subr.mxu0 0.0
        %374 = vmatpush1.msra.mxu0 0.0
        %375 = vmatprep.subr.mxu0 0.0
        %376 = vmatpush1.msra.mxu0 0.0
        %377 = vmatprep.subr.mxu0 0.0
        %378 = vmatpush1.msra.mxu0 0.0
        %379 = vmatprep.subr.mxu0 0.0
        %380 = vmatpush1.msra.mxu0 0.0
        %381 = vmatprep.subr.mxu0 0.0
        %382 = vmatpush1.msra.mxu0 0.0
        %383 = vmatprep.subr.mxu0 0.0
        %384 = vmatpush1.msra.mxu0 0.0
        %385 = vmatprep.subr.mxu0 0.0
        %386 = vmatpush1.msra.mxu0 0.0
        %387 = vmatprep.subr.mxu0 0.0
        %388 = vmatpush1.msra.mxu0 0.0
        %389 = vmatprep.subr.mxu0 0.0
        %390 = vmatpush1.msra.mxu0 0.0
        %391 = vmatprep.subr.mxu0 0.0
        %392 = vmatpush1.msra.mxu0 0.0
        %393 = vmatprep.subr.mxu0 0.0
        %394 = vmatpush1.msra.mxu0 0.0
        %395 = vmatprep.subr.mxu0 0.0
        %396 = vmatpush1.msra.mxu0 0.0
        %397 = vmatprep.subr.mxu0 0.0
        %398 = vmatpush1.msra.mxu0 0.0
        %399 = vmatprep.subr.mxu0 0.0
        %400 = vmatpush1.msra.mxu0 0.0
        %401 = vmatprep.subr.mxu0 0.0
        %402 = vmatpush1.msra.mxu0 0.0
        %403 = vmatprep.subr.mxu0 0.0
        %404 = vmatpush1.msra.mxu0 0.0
        %405 = vmatprep.subr.mxu0 0.0
        %406 = vmatpush1.msra.mxu0 0.0
        %407 = vmatprep.subr.mxu0 0.0
        %408 = vmatpush1.msra.mxu0 0.0
        %409 = vmatprep.subr.mxu0 0.0
        %410 = vmatpush1.msra.mxu0 0.0
        %411 = vmatprep.mubr.f32.mxu0 0.0
        %412 = vmatmul.mubr.f32.gmra.mrb[0].mxu0 %v345
        %v413 = vpop.f32.mrb[0].mxu0
        %v414 = vadd.f32 %v342, %v413
        %v415 = vpop.f32.mrb[0].mxu0
        %416 = vdwg.mxu0
        %417 = vst [vmem:[%s293] sm:$0xff] %v414
        %s418 = sand.u32 %s167, 1
        %s419 = scalar_lea.sflag [#allocation4], %s418
        %s420 = sand.u32 %s167, 1
        %s421 = smul.addr %s420, 8
        %s422 = scalar_lea.vmem [#allocation7], %s421
        // Predicated region
        $region49: #{tpu_custom_call.1} parent=39 // pred_check
          %p423 = pneg %p177
        $region50: #{tpu_custom_call.1} parent=39 // pred_check_branch
          %425 = sbr.rel (%p423) target = $region52
        $region51: #{tpu_custom_call.1} parent=39 // pred_region
          %s427 = ssub.s32 128, 128
          %428 = vsyncadd %s419, %s427
          %s429 = sadd.s32 %s28, %s27
          %s430 = smul.addr %s429, 128
          %s431 = scalar_lea.hbm %s5, %s430
          %s433 = sshll.u32 %s422, 4
          %s434 = int_to_ptr.vmem [resolvable:$true] %s433
          %436 = dma.vmem_to_hbm [thread:$0]  %s434, 128, %s431, %s419
        $region52: #{tpu_custom_call.1} parent=39 // pred_fallthru
          _
      $region40: #{tpu_custom_call.1} parent=5 // pred_fallthru
        _
      %p437 = scmp.le.s32.totalorder 2, %s18
      // Predicated region
      $region53: #{tpu_custom_call.1} parent=5 // pred_check
        %p438 = pneg %p437
      $region54: #{tpu_custom_call.1} parent=5 // pred_check_branch
        %440 = sbr.rel (%p438) target = $region56
      $region55: #{tpu_custom_call.1} parent=5 // pred_region
        %s441 = ssub.s32 %s18, 2
        // Predicated region
        $region57: #{tpu_custom_call.1} parent=55 // pred_check
          %p442 = pneg %p183
        $region58: #{tpu_custom_call.1} parent=55 // pred_check_branch
          %444 = sbr.rel (%p442) target = $region60
        $region59: #{tpu_custom_call.1} parent=55 // pred_region
          %s445 = sand.u32 %s168, 1
          %s446 = scalar_lea.sflag [#allocation4], %s445
          %s447 = sand.u32 %s168, 1
          %s448 = smul.addr %s447, 8
          %s449 = scalar_lea.vmem [#allocation7], %s448
          %450 = dma.done %s446, 128
        $region60: #{tpu_custom_call.1} parent=55 // pred_fallthru
          _
      $region56: #{tpu_custom_call.1} parent=5 // pred_fallthru
        _
    $region6: #{tpu_custom_call.1} parent=1 // loop_footer
      %s22 = sadd.s32 1, %s18
    $region7: #{tpu_custom_call.1} parent=1 // loop_footer_branch
      %17 = sbr.rel target = $region3
    $region8: #{tpu_custom_call.1} parent=1 // loop_exit
      _
    %451 = vsyncpa [#allocation3], 1
    %s452 = scalar_lea.sflag [#allocation3], 1
    %453 = vsyncpa %s452, 1
    %454 = vsyncpa [#allocation6], 1
    %455 = vsyncpa [#allocation4], 1
    %s456 = scalar_lea.sflag [#allocation4], 1
    %457 = vsyncpa %s456, 1

// kernel: tpu_custom_call.1
$region0: #{tpu_custom_call.1}
  #allocation0 [shape = 'u32[]', space=smem, size = 0x4, offset = 0x4, fixed_abs, tag = 'smem constant byte address 0x4 - core index']
  #allocation1 [shape = 'u32[144,128]{1,0:T(1,128)}', space=vmem, size = 0x12000, scoped, tag = 'internal scratch']
  %s0 = inlined_call_operand.hbm [shape: f32[2,8,32], index: 0, kind: input, shape index: {}]
  %s1 = inlined_call_operand.vmem [shape: f32[2,1,32], index: 1, kind: input, shape index: {}]
  %s2 = inlined_call_operand.vmem [shape: f32[2,1,32], index: 2, kind: input, shape index: {}]
  %s3 = inlined_call_operand.hbm [shape: f32[32,128], index: 3, kind: input, shape index: {}]
  %s4 = inlined_call_operand.vmem [shape: f32[1,128], index: 4, kind: input, shape index: {}]
  %s5 = inlined_call_operand.hbm [shape: f32[2,8,128], index: 5, kind: output, shape index: {}]
  %s6 = sld [smem:[#allocation0]]
  $region61: #{tpu_custom_call.1} parent=0
    _
  %s8 = ssub.s32 1, %s6
  %s9 = scalar_select 0, %s8, %s6
  $region1: #{tpu_custom_call.1} parent=0
    #allocation2 [shape = 'u8[8192]{0}', space=vmem, size = 0x2000, scoped, tag = 'input window, operand 0']
    #allocation3 [shape = 's32[2]{0}', space=sflag, size = 0x8, scoped, tag = 'scoped memory for tpu_custom_call.1']
    #allocation4 [shape = 's32[2]{0}', space=sflag, size = 0x8, scoped, tag = 'scoped memory for tpu_custom_call.1']
    #allocation5 [shape = 'u8[16384]{0}', space=vmem, size = 0x4000, scoped, tag = 'input window, operand 3, single buffered']
    #allocation6 [shape = 's32[1]{0}', space=sflag, size = 0x4, scoped, tag = 'scoped memory for tpu_custom_call.1']
    #allocation7 [shape = 'u8[8192]{0}', space=vmem, size = 0x2000, scoped, tag = 'output window, operand 0']
    %10 = vsyncpa [#allocation3], 0
    %s11 = scalar_lea.sflag [#allocation3], 1
    %12 = vsyncpa %s11, 0
    %13 = vsyncpa [#allocation6], 0
    %14 = vsyncpa [#allocation4], 0
    %s15 = scalar_lea.sflag [#allocation4], 1
    %16 = vsyncpa %s15, 0
    loop: start=0, step=1, limit=4
    $region2: #{tpu_custom_call.1} parent=1 // loop_pre_header
      _
    $region3: #{tpu_custom_call.1} parent=1 // loop_header
      %s18 = sphi 0, %s22
      %p19 = scmp.ge.s32.totalorder %s18, 4
      %s25 = sphi 0, %s37
      %s26 = sphi 0, %s33
      %s27 = sphi 0, %s25
      %s28 = sphi 0, %s26
      %s29 = sphi 0, %s27
      %s30 = sphi 0, %s28
      %s42 = sphi 0, %s44
      %s45 = sphi 0, %s42
      %s46 = sphi 0, %s45
      %s62 = sphi 0, %s46
      %s68 = sphi 0, %s70
      %s71 = sphi 0, %s68
      %s72 = sphi 0, %s71
      %s88 = sphi 0, %s72
      %s94 = sphi 0, %s96
      %s97 = sphi 0, %s94
      %s98 = sphi 0, %s97
      %s114 = sphi 0, %s98
      %s118 = sphi 0, %s118
      %s120 = sphi 0, %s118
      %s121 = sphi 0, %s120
      %s135 = sphi 0, %s121
      %s139 = sphi 0, %s139
      %s141 = sphi 0, %s139
      %s142 = sphi 0, %s141
      %s156 = sphi 0, %s142
      %s164 = sphi 0, %s166
      %s167 = sphi 0, %s164
      %s168 = sphi 0, %s167
      %s184 = sphi 0, %s168
    $region4: #{tpu_custom_call.1} parent=1 // loop_header_branch
      %21 = sbr.rel (%p19) target = $region8
    $region5: #{tpu_custom_call.1} parent=1 // loop_body
      %s23 = ssub.s32 %s18, 1
      %s24 = ssub.s32 %s18, 2
      %s31 = sadd.s32 1, %s26
      %p32 = scmp.ge.s32.totalorder %s31, 1
      %s33 = scalar_select %p32, 0, %s31
      %s34 = sadd.s32 1, %s25
      %s35 = scalar_select %p32, %s34, %s25
      %p36 = scmp.ge.s32.totalorder %s35, 2
      %s37 = scalar_select %p36, 0, %s35
      %s38 = ssub.s32 %s25, %s37
      %s39 = ssub.s32 %s26, %s33
      %s40 = sor.u32 %s38, %s39
      %p41 = scmp.eq.s32.totalorder %s40, 0
      %s43 = sadd.s32 %s42, 1
      %s44 = scalar_select %p41, %s42, %s43
      %p47 = pneg %p41
      %p48 = scmp.eq.s32.totalorder %s18, 1
      %p49 = por %p47, %p48
      %p50 = scmp.ne.s32.totalorder %s42, %s45
      %p51 = scmp.eq.s32.totalorder %s18, 0
      %p52 = por %p50, %p51
      %p53 = scmp.ne.s32.totalorder %s42, %s45
      %p54 = scmp.eq.s32.totalorder %s23, 1
      %p55 = por %p53, %p54
      %p56 = scmp.ne.s32.totalorder %s45, %s46
      %p57 = scmp.eq.s32.totalorder %s23, 0
      %p58 = por %p56, %p57
      %p59 = scmp.ne.s32.totalorder %s45, %s46
      %p60 = scmp.eq.s32.totalorder %s24, 1
      %p61 = por %p59, %p60
      %p63 = scmp.ne.s32.totalorder %s46, %s62
      %p64 = scmp.eq.s32.totalorder %s24, 0
      %p65 = por %p63, %p64
      %s66 = ssub.s32 %s25, %s37
      %p67 = scmp.eq.s32.totalorder %s66, 0
      %s69 = sadd.s32 %s68, 1
      %s70 = scalar_select %p67, %s68, %s69
      %p73 = pneg %p67
      %p74 = scmp.eq.s32.totalorder %s18, 1
      %p75 = por %p73, %p74
      %p76 = scmp.ne.s32.totalorder %s68, %s71
      %p77 = scmp.eq.s32.totalorder %s18, 0
      %p78 = por %p76, %p77
      %p79 = scmp.ne.s32.totalorder %s68, %s71
      %p80 = scmp.eq.s32.totalorder %s23, 1
      %p81 = por %p79, %p80
      %p82 = scmp.ne.s32.totalorder %s71, %s72
      %p83 = scmp.eq.s32.totalorder %s23, 0
      %p84 = por %p82, %p83
      %p85 = scmp.ne.s32.totalorder %s71, %s72
      %p86 = scmp.eq.s32.totalorder %s24, 1
      %p87 = por %p85, %p86
      %p89 = scmp.ne.s32.totalorder %s72, %s88
      %p90 = scmp.eq.s32.totalorder %s24, 0
      %p91 = por %p89, %p90
      %s92 = ssub.s32 %s25, %s37
      %p93 = scmp.eq.s32.totalorder %s92, 0
      %s95 = sadd.s32 %s94, 1
      %s96 = scalar_select %p93, %s94, %s95
      %p99 = pneg %p93
      %p100 = scmp.eq.s32.totalorder %s18, 1
      %p101 = por %p99, %p100
      %p102 = scmp.ne.s32.totalorder %s94, %s97
      %p103 = scmp.eq.s32.totalorder %s18, 0
      %p104 = por %p102, %p103
      %p105 = scmp.ne.s32.totalorder %s94, %s97
      %p106 = scmp.eq.s32.totalorder %s23, 1
      %p107 = por %p105, %p106
      %p108 = scmp.ne.s32.totalorder %s97, %s98
      %p109 = scmp.eq.s32.totalorder %s23, 0
      %p110 = por %p108, %p109
      %p111 = scmp.ne.s32.totalorder %s97, %s98
      %p112 = scmp.eq.s32.totalorder %s24, 1
      %p113 = por %p111, %p112
      %p115 = scmp.ne.s32.totalorder %s98, %s114
      %p116 = scmp.eq.s32.totalorder %s24, 0
      %p117 = por %p115, %p116
      %s119 = sadd.s32 %s118, 1
      %p122 = scmp.eq.s32.totalorder %s18, 1
      %p123 = scmp.ne.s32.totalorder %s118, %s120
      %p124 = scmp.eq.s32.totalorder %s18, 0
      %p125 = por %p123, %p124
      %p126 = scmp.ne.s32.totalorder %s118, %s120
      %p127 = scmp.eq.s32.totalorder %s23, 1
      %p128 = por %p126, %p127
      %p129 = scmp.ne.s32.totalorder %s120, %s121
      %p130 = scmp.eq.s32.totalorder %s23, 0
      %p131 = por %p129, %p130
      %p132 = scmp.ne.s32.totalorder %s120, %s121
      %p133 = scmp.eq.s32.totalorder %s24, 1
      %p134 = por %p132, %p133
      %p136 = scmp.ne.s32.totalorder %s121, %s135
      %p137 = scmp.eq.s32.totalorder %s24, 0
      %p138 = por %p136, %p137
      %s140 = sadd.s32 %s139, 1
      %p143 = scmp.eq.s32.totalorder %s18, 1
      %p144 = scmp.ne.s32.totalorder %s139, %s141
      %p145 = scmp.eq.s32.totalorder %s18, 0
      %p146 = por %p144, %p145
      %p147 = scmp.ne.s32.totalorder %s139, %s141
      %p148 = scmp.eq.s32.totalorder %s23, 1
      %p149 = por %p147, %p148
      %p150 = scmp.ne.s32.totalorder %s141, %s142
      %p151 = scmp.eq.s32.totalorder %s23, 0
      %p152 = por %p150, %p151
      %p153 = scmp.ne.s32.totalorder %s141, %s142
      %p154 = scmp.eq.s32.totalorder %s24, 1
      %p155 = por %p153, %p154
      %p157 = scmp.ne.s32.totalorder %s142, %s156
      %p158 = scmp.eq.s32.totalorder %s24, 0
      %p159 = por %p157, %p158
      %s160 = ssub.s32 %s25, %s37
      %s161 = ssub.s32 %s26, %s33
      %s162 = sor.u32 %s160, %s161
      %p163 = scmp.eq.s32.totalorder %s162, 0
      %s165 = sadd.s32 %s164, 1
      %s166 = scalar_select %p163, %s164, %s165
      %p169 = pneg %p163
      %p170 = scmp.eq.s32.totalorder %s18, 1
      %p171 = por %p169, %p170
      %p172 = scmp.ne.s32.totalorder %s164, %s167
      %p173 = scmp.eq.s32.totalorder %s18, 0
      %p174 = por %p172, %p173
      %p175 = scmp.ne.s32.totalorder %s164, %s167
      %p176 = scmp.eq.s32.totalorder %s23, 1
      %p177 = por %p175, %p176
      %p178 = scmp.ne.s32.totalorder %s167, %s168
      %p179 = scmp.eq.s32.totalorder %s23, 0
      %p180 = por %p178, %p179
      %p181 = scmp.ne.s32.totalorder %s167, %s168
      %p182 = scmp.eq.s32.totalorder %s24, 1
      %p183 = por %p181, %p182
      %p185 = scmp.ne.s32.totalorder %s168, %s184
      %p186 = scmp.eq.s32.totalorder %s24, 0
      %p187 = por %p185, %p186
      %p188 = scmp.le.s32.totalorder 1, %s18
      %p189 = scmp.lt.s32.totalorder %s18, 3
      %p190 = pnand %p188, %p189
      %p191 = pneg %p190
      // Predicated region
      $region9: #{tpu_custom_call.1} parent=5 // pred_check
        _
      $region10: #{tpu_custom_call.1} parent=5 // pred_check_branch
        %193 = sbr.rel (%p190) target = $region12
      $region11: #{tpu_custom_call.1} parent=5 // pred_region
        %s194 = ssub.s32 %s18, 1
        // Predicated region
        $region13: #{tpu_custom_call.1} parent=11 // pred_check
          %p195 = pneg %p131
        $region14: #{tpu_custom_call.1} parent=11 // pred_check_branch
          %197 = sbr.rel (%p195) target = $region16
        $region15: #{tpu_custom_call.1} parent=11 // pred_region
          %s199 = ssub.s32 512, 512
          %200 = vsyncadd [#allocation6], %s199
          %s201 = sshll.u32 [#allocation5], 4
          %s202 = int_to_ptr.vmem [resolvable:$true] %s201
          %207 = dma.hbm_to_vmem [thread:$0]  %s3, 512, %s202, [#allocation6], 128, 128, 8
        $region16: #{tpu_custom_call.1} parent=11 // pred_fallthru
          _
        // Predicated region
        $region17: #{tpu_custom_call.1} parent=11 // pred_check
          %p208 = pneg %p152
        $region18: #{tpu_custom_call.1} parent=11 // pred_check_branch
          %210 = sbr.rel (%p208) target = $region20
        $region19: #{tpu_custom_call.1} parent=11 // pred_region
          _
        $region20: #{tpu_custom_call.1} parent=11 // pred_fallthru
          _
      $region12: #{tpu_custom_call.1} parent=5 // pred_fallthru
        _
      %p211 = scmp.lt.s32.totalorder %s18, 2
      // Predicated region
      $region21: #{tpu_custom_call.1} parent=5 // pred_check
        %p212 = pneg %p211
      $region22: #{tpu_custom_call.1} parent=5 // pred_check_branch
        %214 = sbr.rel (%p212) target = $region24
      $region23: #{tpu_custom_call.1} parent=5 // pred_region
        // Predicated region
        $region25: #{tpu_custom_call.1} parent=23 // pred_check
          %p215 = pneg %p52
        $region26: #{tpu_custom_call.1} parent=23 // pred_check_branch
          %217 = sbr.rel (%p215) target = $region28
        $region27: #{tpu_custom_call.1} parent=23 // pred_region
          %s218 = sand.u32 %s42, 1
          %s219 = scalar_lea.sflag [#allocation3], %s218
          %s220 = sand.u32 %s42, 1
          %s221 = smul.addr %s220, 8
          %s222 = scalar_lea.vmem [#allocation2], %s221
          %s224 = ssub.s32 128, 128
          %225 = vsyncadd %s219, %s224
          %s226 = sadd.s32 %s26, %s25
          %s227 = smul.addr %s226, 128
          %s228 = scalar_lea.hbm %s0, %s227
          %s230 = sshll.u32 %s222, 4
          %s231 = int_to_ptr.vmem [resolvable:$true] %s230
          %233 = dma.hbm_to_vmem [thread:$0]  %s228, 128, %s231, %s219
        $region28: #{tpu_custom_call.1} parent=23 // pred_fallthru
          _
        // Predicated region
        $region29: #{tpu_custom_call.1} parent=23 // pred_check
          %p234 = pneg %p78
        $region30: #{tpu_custom_call.1} parent=23 // pred_check_branch
          %236 = sbr.rel (%p234) target = $region32
        $region31: #{tpu_custom_call.1} parent=23 // pred_region
          %p237 = scmp.lt.s32.totalorder %s25, 1
          %s238 = scalar_select %p237, %s25, 1
          %s239 = scalar_lea.vmem %s1, %s238
        $region32: #{tpu_custom_call.1} parent=23 // pred_fallthru
          _
        // Predicated region
        $region33: #{tpu_custom_call.1} parent=23 // pred_check
          %p240 = pneg %p104
        $region34: #{tpu_custom_call.1} parent=23 // pred_check_branch
          %242 = sbr.rel (%p240) target = $region36
        $region35: #{tpu_custom_call.1} parent=23 // pred_region
          %p243 = scmp.lt.s32.totalorder %s25, 1
          %s244 = scalar_select %p243, %s25, 1
          %s245 = scalar_lea.vmem %s2, %s244
        $region36: #{tpu_custom_call.1} parent=23 // pred_fallthru
          _
      $region24: #{tpu_custom_call.1} parent=5 // pred_fallthru
        _
      %p246 = scmp.le.s32.totalorder 1, %s18
      %p247 = scmp.lt.s32.totalorder %s18, 3
      %p248 = pnand %p246, %p247
      %p249 = pneg %p248
      // Predicated region
      $region37: #{tpu_custom_call.1} parent=5 // pred_check
        _
      $region38: #{tpu_custom_call.1} parent=5 // pred_check_branch
        %251 = sbr.rel (%p248) target = $region40
      $region39: #{tpu_custom_call.1} parent=5 // pred_region
        %s252 = ssub.s32 %s18, 1
        %s253 = sand.u32 %s45, 1
        %s254 = scalar_lea.sflag [#allocation3], %s253
        %s255 = sand.u32 %s45, 1
        %s256 = smul.addr %s255, 8
        %s257 = scalar_lea.vmem [#allocation2], %s256
        // Predicated region
        $region41: #{tpu_custom_call.1} parent=39 // pred_check
          %p258 = pneg %p58
        $region42: #{tpu_custom_call.1} parent=39 // pred_check_branch
          %260 = sbr.rel (%p258) target = $region44
        $region43: #{tpu_custom_call.1} parent=39 // pred_region
          %261 = dma.done %s254, 128
        $region44: #{tpu_custom_call.1} parent=39 // pred_fallthru
          _
        // Predicated region
        $region45: #{tpu_custom_call.1} parent=39 // pred_check
          %p262 = pneg %p131
        $region46: #{tpu_custom_call.1} parent=39 // pred_check_branch
          %264 = sbr.rel (%p262) target = $region48
        $region47: #{tpu_custom_call.1} parent=39 // pred_region
          %265 = dma.done [#allocation6], 512
        $region48: #{tpu_custom_call.1} parent=39 // pred_fallthru
          _
        %s266 = sand.u32 %s45, 1
        %s267 = scalar_lea.sflag [#allocation3], %s266
        %s268 = sand.u32 %s45, 1
        %s269 = smul.addr %s268, 8
        %s270 = scalar_lea.vmem [#allocation2], %s269
        %p271 = pneg %p58
        %p272 = pneg %p55
        %p273 = scmp.lt.s32.totalorder %s27, 1
        %s274 = scalar_select %p273, %s27, 1
        %s275 = scalar_lea.vmem %s1, %s274
        %p276 = pneg %p84
        %p277 = pneg %p81
        %p278 = scmp.lt.s32.totalorder %s27, 1
        %s279 = scalar_select %p278, %s27, 1
        %s280 = scalar_lea.vmem %s2, %s279
        %p281 = pneg %p110
        %p282 = pneg %p107
        %p283 = pneg %p131
        %p284 = pneg %p128
        %p285 = pneg %p152
        %p286 = pneg %p149
        %p287 = pneg %p180
        %p288 = pneg %p177
        %s289 = sand.u32 %s167, 1
        %s290 = scalar_lea.sflag [#allocation4], %s289
        %s291 = sand.u32 %s167, 1
        %s292 = smul.addr %s291, 8
        %s293 = scalar_lea.vmem [#allocation7], %s292
        %p294 = scmp.lt.s32.totalorder %s27, 1
        %s295 = scalar_select %p294, %s27, 1
        %s296 = scalar_lea.vmem %s1, %s295
        %p297 = scmp.lt.s32.totalorder %s27, 1
        %s298 = scalar_select %p297, %s27, 1
        %s299 = scalar_lea.vmem %s2, %s298
        %v300 = vld [vmem:[%s257] sm:$0xff]
        %v301 = vld [vmem:[%s296] sm:$0x1]
        %v302 = vld [vmem:[%s299] sm:$0x1]
        %vm303 = vcmask 261120
        %v304 = vsel %vm303, %v300, 0.0
        %305 = vadd.xlane.f32.xlu0 %v304
        %v306 = vpop.xlane.xlu0 %305
        %v307 = vrcp.pop 32.0
        %v308 = vmul.f32 %v306, %v307
        %v309 = vsub.f32 %v300, %v308
        %v310 = vmul.f32 %v309, %v309
        %v311 = vsel %vm303, %v310, 0.0
        %312 = vadd.xlane.f32.xlu0 %v311
        %v313 = vpop.xlane.xlu0 %312
        %v314 = vmul.f32 %v313, %v307
        %v315 = vadd.f32 %v314, 1e-06
        %v316 = vrsqrt.pop %v315
        %v317 = vmul.f32 %v309, %v316
        %v318 = vadd.f32 %v302, 1.0
        %v320 = vlaneseq
        %v321 = vshrl.u32 %v320, 7
        %v322 = vsub.s32 0, %v321
        %v323 = vrot.slane %v318, %v322
        %v325 = vmul.f32 %v317, %v323
        %v327 = vlaneseq
        %v328 = vshrl.u32 %v327, 7
        %v329 = vsub.s32 0, %v328
        %v330 = vrot.slane %v301, %v329
        %v332 = vadd.f32 %v325, %v330
        %v333 = vld [vmem:[#allocation5] sm:$0xff]
        %v334 = vld [vmem:[#allocation5 + $0x8] sm:$0xff]
        %v335 = vld [vmem:[#allocation5 + $0x10] sm:$0xff]
        %v336 = vld [vmem:[#allocation5 + $0x18] sm:$0xff]
        %v337 = vld [vmem:[%s4] sm:$0x1]
        %v339 = vlaneseq
        %v340 = vshrl.u32 %v339, 7
        %v341 = vsub.s32 0, %v340
        %v342 = vrot.slane %v337, %v341
        %v345 = vsel %vm303, %v332, 0
        %347 = vmatprep.subr.mxu0 0.0
        %348 = vmatpush1.msra.mxu0 %v333
        %349 = vmatprep.subr.mxu0 0.0
        %350 = vmatpush1.msra.mxu0 %v334
        %351 = vmatprep.subr.mxu0 0.0
        %352 = vmatpush1.msra.mxu0 %v335
        %353 = vmatprep.subr.mxu0 0.0
        %354 = vmatpush1.msra.mxu0 %v336
        %355 = vmatprep.subr.mxu0 0.0
        %356 = vmatpush1.msra.mxu0 0.0
        %357 = vmatprep.subr.mxu0 0.0
        %358 = vmatpush1.msra.mxu0 0.0
        %359 = vmatprep.subr.mxu0 0.0
        %360 = vmatpush1.msra.mxu0 0.0
        %361 = vmatprep.subr.mxu0 0.0
        %362 = vmatpush1.msra.mxu0 0.0
        %363 = vmatprep.subr.mxu0 0.0
        %364 = vmatpush1.msra.mxu0 0.0
        %365 = vmatprep.subr.mxu0 0.0
        %366 = vmatpush1.msra.mxu0 0.0
        %367 = vmatprep.subr.mxu0 0.0
        %368 = vmatpush1.msra.mxu0 0.0
        %369 = vmatprep.subr.mxu0 0.0
        %370 = vmatpush1.msra.mxu0 0.0
        %371 = vmatprep.subr.mxu0 0.0
        %372 = vmatpush1.msra.mxu0 0.0
        %373 = vmatprep.subr.mxu0 0.0
        %374 = vmatpush1.msra.mxu0 0.0
        %375 = vmatprep.subr.mxu0 0.0
        %376 = vmatpush1.msra.mxu0 0.0
        %377 = vmatprep.subr.mxu0 0.0
        %378 = vmatpush1.msra.mxu0 0.0
        %379 = vmatprep.subr.mxu0 0.0
        %380 = vmatpush1.msra.mxu0 0.0
        %381 = vmatprep.subr.mxu0 0.0
        %382 = vmatpush1.msra.mxu0 0.0
        %383 = vmatprep.subr.mxu0 0.0
        %384 = vmatpush1.msra.mxu0 0.0
        %385 = vmatprep.subr.mxu0 0.0
        %386 = vmatpush1.msra.mxu0 0.0
        %387 = vmatprep.subr.mxu0 0.0
        %388 = vmatpush1.msra.mxu0 0.0
        %389 = vmatprep.subr.mxu0 0.0
        %390 = vmatpush1.msra.mxu0 0.0
        %391 = vmatprep.subr.mxu0 0.0
        %392 = vmatpush1.msra.mxu0 0.0
        %393 = vmatprep.subr.mxu0 0.0
        %394 = vmatpush1.msra.mxu0 0.0
        %395 = vmatprep.subr.mxu0 0.0
        %396 = vmatpush1.msra.mxu0 0.0
        %397 = vmatprep.subr.mxu0 0.0
        %398 = vmatpush1.msra.mxu0 0.0
        %399 = vmatprep.subr.mxu0 0.0
        %400 = vmatpush1.msra.mxu0 0.0
        %401 = vmatprep.subr.mxu0 0.0
        %402 = vmatpush1.msra.mxu0 0.0
        %403 = vmatprep.subr.mxu0 0.0
        %404 = vmatpush1.msra.mxu0 0.0
        %405 = vmatprep.subr.mxu0 0.0
        %406 = vmatpush1.msra.mxu0 0.0
        %407 = vmatprep.subr.mxu0 0.0
        %408 = vmatpush1.msra.mxu0 0.0
        %409 = vmatprep.subr.mxu0 0.0
        %410 = vmatpush1.msra.mxu0 0.0
        %411 = vmatprep.mubr.f32.mxu0 0.0
        %412 = vmatmul.mubr.f32.gmra.mrb[0].mxu0 %v345
        %v413 = vpop.f32.mrb[0].mxu0
        %v414 = vadd.f32 %v342, %v413
        %v415 = vpop.f32.mrb[0].mxu0
        %416 = vdwg.mxu0
        %417 = vst [vmem:[%s293] sm:$0xff] %v414
        %s418 = sand.u32 %s167, 1
        %s419 = scalar_lea.sflag [#allocation4], %s418
        %s420 = sand.u32 %s167, 1
        %s421 = smul.addr %s420, 8
        %s422 = scalar_lea.vmem [#allocation7], %s421
        // Predicated region
        $region49: #{tpu_custom_call.1} parent=39 // pred_check
          %p423 = pneg %p177
        $region50: #{tpu_custom_call.1} parent=39 // pred_check_branch
          %425 = sbr.rel (%p423) target = $region52
        $region51: #{tpu_custom_call.1} parent=39 // pred_region
          %s427 = ssub.s32 128, 128
          %428 = vsyncadd %s419, %s427
          %s429 = sadd.s32 %s28, %s27
          %s430 = smul.addr %s429, 128
          %s431 = scalar_lea.hbm %s5, %s430
          %s433 = sshll.u32 %s422, 4
          %s434 = int_to_ptr.vmem [resolvable:$true] %s433
          %436 = dma.vmem_to_hbm [thread:$0]  %s434, 128, %s431, %s419
        $region52: #{tpu_custom_call.1} parent=39 // pred_fallthru
          _
      $region40: #{tpu_custom_call.1} parent=5 // pred_fallthru
        _
      %p437 = scmp.le.s32.totalorder 2, %s18
      // Predicated region
      $region53: #{tpu_custom_call.1} parent=5 // pred_check
        %p438 = pneg %p437
      $region54: #{tpu_custom_call.1} parent=5 // pred_check_branch
        %440 = sbr.rel (%p438) target = $region56
      $region55: #{tpu_custom_call.1} parent=5 // pred_region
        %s441 = ssub.s32 %s18, 2
        // Predicated region
        $region57: #{tpu_custom_call.1} parent=55 // pred_check
          %p442 = pneg %p183
        $region58: #{tpu_custom_call.1} parent=55 // pred_check_branch
          %444 = sbr.rel (%p442) target = $region60
        $region59: #{tpu_custom_call.1} parent=55 // pred_region
          %s445 = sand.u32 %s168, 1
          %s446 = scalar_lea.sflag [#allocation4], %s445
          %s447 = sand.u32 %s168, 1
          %s448 = smul.addr %s447, 8
          %s449 = scalar_lea.vmem [#allocation7], %s448
          %450 = dma.done %s446, 128
        $region60: #{tpu_custom_call.1} parent=55 // pred_fallthru
          _
      $region56: #{tpu_custom_call.1} parent=5 // pred_fallthru
        _
    $region6: #{tpu_custom_call.1} parent=1 // loop_footer
      %s22 = sadd.s32 1, %s18
    $region7: #{tpu_custom_call.1} parent=1 // loop_footer_branch
      %17 = sbr.rel target = $region3
    $region8: #{tpu_custom_call.1} parent=1 // loop_exit
      _
    %451 = vsyncpa [#allocation3], 1
    %s452 = scalar_lea.sflag [#allocation3], 1
    %453 = vsyncpa %s452, 1
    %454 = vsyncpa [#allocation6], 1
    %455 = vsyncpa [#allocation4], 1
    %s456 = scalar_lea.sflag [#allocation4], 1
    %457 = vsyncpa %s456, 1

</llo_original>
